<compile_context>
chip_gen: v7x
topology: tpu7x:2x2x1
jax: 0.10.0
libtpu: 0.0.40
codegen_flags: <defaults>
</compile_context>

<pallas_src>
import math
import numpy as np
import jax
import jax.numpy as jnp
from jax import lax
from jax.experimental import pallas as pl
from jax.experimental.pallas import tpu as pltpu


# ---------------- host-side construction of the resample operator ----------------
def _lanczos(x, a):
    cond = np.logical_and(-a < x, x < a)
    out = np.where(cond, np.sinc(x) * np.sinc(x / a), 0.0)
    return out / out.sum()


def _ramp(ratio, width):
    n = math.ceil(width / ratio + 1)
    out = np.arange(n, dtype=np.float64) * ratio
    return np.concatenate([-out[1:][::-1], out])[1:-1]


def _reflect(m, h):
    while m < 0 or m >= h:
        if m < 0:
            m = -m
        if m >= h:
            m = 2 * (h - 1) - m
    return m


def _lanczos_conv_matrix(h, dh):
    # reflect-pad + 1-D lanczos conv along one axis, as an (h, h) matrix
    k = _lanczos(_ramp(dh / h, 2), 2)
    K = k.shape[0]
    pad = (K - 1) // 2
    L = np.zeros((h, h), np.float64)
    for i in range(h):
        for t in range(K):
            L[i, _reflect(i + t - pad, h)] += k[t]
    return L


def _cubic_w(t, A=-0.75):
    t = abs(t)
    if t <= 1.0:
        return (A + 2) * t ** 3 - (A + 3) * t ** 2 + 1.0
    if t < 2.0:
        return A * t ** 3 - 5 * A * t ** 2 + 8 * A * t - 4 * A
    return 0.0


def _bicubic_matrix(h, dh):
    # F.interpolate(mode='bicubic', align_corners=True) along one axis, (dh, h)
    B = np.zeros((dh, h), np.float64)
    scale = 0.0 if dh == 1 else (h - 1) / (dh - 1)
    for i in range(dh):
        s = i * scale
        f = math.floor(s)
        frac = s - f
        for t in range(-1, 3):
            j = min(max(f + t, 0), h - 1)
            B[i, j] += _cubic_w(t - frac)
    return B


def _resample_matrix(h, dh):
    B = _bicubic_matrix(h, dh)
    if dh < h:
        B = B @ _lanczos_conv_matrix(h, dh)
    return B.astype(np.float32)


# --------------------------------- Pallas kernel ---------------------------------
def _cutout_kernel(facs_ref, x_ref, mh_ref, mw_ref, noise_ref, out_ref):
    # facs_ref : (cutn,)             f32, SMEM, per-cutout noise scale
    # x_ref    : (C*sideY, sideX)    bf16, full image, resident (constant index map)
    # mh_ref   : (1, cs, sideY)      bf16, H-axis resample matrix, crop folded in
    # mw_ref   : (1, csp, sideX)     bf16, W-axis resample matrix, crop folded in,
    #                                rows lane-padded to csp (multiple of 128)
    # noise_ref: (1, C, cs, csp)     f32 gaussian noise (padded lanes discarded later)
    # out_ref  : (1, C, cs, csp)     output, lane-dense stores
    i = pl.program_id(0)
    fac = facs_ref[i]

    x = x_ref[...]        # (C*sideY, sideX) bf16
    mh = mh_ref[0]        # (cs, sideY)      bf16
    mw = mw_ref[0]        # (csp, sideX)     bf16

    C = out_ref.shape[1]
    sideY = mh_ref.shape[2]

    # W-axis contraction, channels fused into the M dim of a single MXU matmul:
    #   t[c*sideY + y, w] = sum_x img[c, y, x] * MW[w, x]
    t = lax.dot_general(x, mw, (((1,), (1,)), ((), ())),
                        preferred_element_type=jnp.float32)        # (C*sideY, csp) f32
    t = t.astype(jnp.bfloat16)

    # H-axis contraction per channel (C is tiny, static unroll); each matmul is
    # (cs, sideY) @ (sideY, csp) with full-width, unmasked (cs, csp) stores.
    for c in range(C):
        tc = t[c * sideY:(c + 1) * sideY, :]                        # (sideY, csp)
        r = jnp.dot(mh, tc, preferred_element_type=jnp.float32)     # (cs, csp) f32
        out_ref[0, c] = (r + fac * noise_ref[0, c]).astype(out_ref.dtype)


def make_cutouts(x, key, cut_size, cutn, cut_pow=1.0, noise_fac=0.1):
    """Pallas implementation of MakeCutoutsKornia.forward (minus kornia augs)."""
    N, C, sideY, sideX = x.shape
    assert N == 1, "original module's noise broadcast requires batch size 1"
    max_size = min(sideX, sideY)
    min_size = min(sideX, sideY, cut_size)
    csp = max(128, ((cut_size + 127) // 128) * 128)   # lane-padded output width

    k_geo, k_fac, k_noise = jax.random.split(key, 3)
    # single batched draw + single device->host sync for all crop geometry
    g = np.asarray(jax.random.uniform(k_geo, (cutn, 3), jnp.float32))

    mhs = np.zeros((cutn, cut_size, sideY), np.float32)
    mws = np.zeros((cutn, csp, sideX), np.float32)
    mat_cache = {}
    for n in range(cutn):
        u, ux, uy = float(g[n, 0]), float(g[n, 1]), float(g[n, 2])
        size = int(u ** cut_pow * (max_size - min_size) + min_size)
        size = max(min_size, min(size, max_size))
        offsetx = min(int(ux * (sideX - size + 1)), sideX - size)
        offsety = min(int(uy * (sideY - size + 1)), sideY - size)
        if size not in mat_cache:
            mat_cache[size] = _resample_matrix(size, cut_size)      # (cs, size)
        M = mat_cache[size]
        # fold the crop window into the resample operator (zero cols elsewhere)
        mhs[n, :, offsety:offsety + size] = M
        mws[n, :cut_size, offsetx:offsetx + size] = M

    # image shipped once, channels flattened into the row (sublane) axis, bf16
    X2d = x[0].reshape(C * sideY, sideX).astype(jnp.bfloat16)
    MH = jnp.asarray(mhs, jnp.bfloat16)
    MW = jnp.asarray(mws, jnp.bfloat16)
    facs = jax.random.uniform(k_fac, (cutn,), jnp.float32, 0.0, noise_fac)
    noise = jax.random.normal(k_noise, (cutn, C, cut_size, csp), jnp.float32)

    grid_spec = pltpu.PrefetchScalarGridSpec(
        num_scalar_prefetch=0,
        grid=(cutn,),
        in_specs=[
            pl.BlockSpec(memory_space=pltpu.MemorySpace.SMEM),                # facs
            pl.BlockSpec((C * sideY, sideX), lambda i: (0, 0)),               # image (resident)
            pl.BlockSpec((1, cut_size, sideY), lambda i: (i, 0, 0)),          # MH
            pl.BlockSpec((1, csp, sideX), lambda i: (i, 0, 0)),               # MW
            pl.BlockSpec((1, C, cut_size, csp), lambda i: (i, 0, 0, 0)),      # noise
        ],
        out_specs=pl.BlockSpec((1, C, cut_size, csp), lambda i: (i, 0, 0, 0)),
    )
    out_padded = pl.pallas_call(
        _cutout_kernel,
        out_shape=jax.ShapeDtypeStruct((cutn, C, cut_size, csp), x.dtype),
        grid_spec=grid_spec,
        compiler_params=pltpu.CompilerParams(
            dimension_semantics=("parallel",),
            vmem_limit_bytes=32 * 1024 * 1024,
        ),
    )(facs, X2d, MH, MW, noise)

    out = out_padded[..., :cut_size]   # strip lane padding
    return out, (X2d, MH, MW, facs, noise)


if __name__ == "__main__":
    cut_size, cutn, cut_pow, noise_fac = 8, 4, 1.0, 0.1
    key = jax.random.PRNGKey(0)
    k_in, k_fwd = jax.random.split(key)
    x = jax.random.normal(k_in, (1, 3, 16, 16), jnp.float32)   # NCHW input image

    out, (X2d, MH, MW, facs, noise) = make_cutouts(
        x, k_fwd, cut_size, cutn, cut_pow, noise_fac)
    out = jax.block_until_ready(out)
    assert out.shape == (cutn, 3, cut_size, cut_size)

    # numpy reference for the same linear operator + noise (sanity check),
    # using the bf16-rounded operands and mimicking the kernel's contraction
    # order (W first, intermediate rounded to bf16, then H).
    C, sideY, sideX = 3, 16, 16
    Xn = np.asarray(X2d.astype(jnp.float32)).reshape(C, sideY, sideX)
    MHn = np.asarray(MH.astype(jnp.float32))
    MWn = np.asarray(MW.astype(jnp.float32))[:, :cut_size, :]
    t_ref = np.einsum("cyx,kwx->kcyw", Xn, MWn)                       # W contraction
    t_ref = np.asarray(jnp.asarray(t_ref, jnp.bfloat16).astype(jnp.float32))
    ref = np.einsum("khy,kcyw->kchw", MHn, t_ref)                     # H contraction
    ref = ref + np.asarray(facs)[:, None, None, None] * np.asarray(noise)[..., :cut_size]
    np.testing.assert_allclose(np.asarray(out), ref, rtol=2e-2, atol=2e-2)

    print("KERNEL_OK")
</pallas_src>

<mosaic_0001>
module attributes {stable_mosaic.version = 11 : i64} {
  func.func @_cutout_kernel(%arg0: i32, %arg1: memref<4xf32, #tpu.memory_space<smem>>, %arg2: memref<48x16xbf16, #tpu.memory_space<vmem>>, %arg3: memref<1x8x16xbf16, #tpu.memory_space<vmem>>, %arg4: memref<1x128x16xbf16, #tpu.memory_space<vmem>>, %arg5: memref<1x3x8x128xf32, #tpu.memory_space<vmem>>, %arg6: memref<1x3x8x128xf32, #tpu.memory_space<vmem>>) attributes {dimension_semantics = [#tpu.dimension_semantics<parallel>], iteration_bounds = array<i64: 4>, scalar_prefetch = 0 : i64, scratch_operands = 0 : i64, tpu.core_type = #tpu.core_type<tc>, window_params = [{transform_indices = @transform_0, window_bounds = array<i64: 4>}, {pipeline_mode = #tpu.pipeline_mode<synchronous>, transform_indices = @transform_1, window_bounds = array<i64: 48, 16>}, {transform_indices = @transform_2, window_bounds = array<i64: 1, 8, 16>}, {transform_indices = @transform_3, window_bounds = array<i64: 1, 128, 16>}, {transform_indices = @transform_4, window_bounds = array<i64: 1, 3, 8, 128>}, {transform_indices = @transform_5, window_bounds = array<i64: 1, 3, 8, 128>}]} {
    %0 = arith.index_cast %arg0 : i32 to index
    %1 = memref.load %arg1[%0] : memref<4xf32, #tpu.memory_space<smem>>
    %c0 = arith.constant 0 : index
    %c0_0 = arith.constant 0 : index
    %2 = vector.load %arg2[%c0, %c0_0] : memref<48x16xbf16, #tpu.memory_space<vmem>>, vector<48x16xbf16>
    %c0_1 = arith.constant 0 : index
    %c0_2 = arith.constant 0 : index
    %c0_3 = arith.constant 0 : index
    %3 = vector.load %arg3[%c0_1, %c0_2, %c0_3] : memref<1x8x16xbf16, #tpu.memory_space<vmem>>, vector<1x8x16xbf16>
    %4 = vector.shape_cast %3 : vector<1x8x16xbf16> to vector<8x16xbf16>
    %c0_4 = arith.constant 0 : index
    %c0_5 = arith.constant 0 : index
    %c0_6 = arith.constant 0 : index
    %5 = vector.load %arg4[%c0_4, %c0_5, %c0_6] : memref<1x128x16xbf16, #tpu.memory_space<vmem>>, vector<1x128x16xbf16>
    %6 = vector.shape_cast %5 : vector<1x128x16xbf16> to vector<128x16xbf16>
    %cst = arith.constant dense<0.000000e+00> : vector<48x128xf32>
    %7 = tpu.matmul %2, %6, %cst {dimension_numbers = #tpu.dot_dimension_numbers<[1], [1], [0], [0], [0, 0, 1, 0], [], []>} : vector<48x16xbf16>, vector<128x16xbf16>, vector<48x128xf32> -> vector<48x128xf32>
    %8 = arith.truncf %7 : vector<48x128xf32> to vector<48x128xbf16>
    %9 = vector.extract_strided_slice %8 {offsets = [0, 0], sizes = [16, 128], strides = [1, 1]} : vector<48x128xbf16> to vector<16x128xbf16>
    %cst_7 = arith.constant dense<0.000000e+00> : vector<8x128xf32>
    %10 = tpu.matmul %4, %9, %cst_7 {dimension_numbers = #tpu.dot_dimension_numbers<[1], [0], [0], [1], [0, 0, 1, 1], [], []>} : vector<8x16xbf16>, vector<16x128xbf16>, vector<8x128xf32> -> vector<8x128xf32>
    %c0_8 = arith.constant 0 : index
    %c0_9 = arith.constant 0 : index
    %c0_10 = arith.constant 0 : index
    %c0_11 = arith.constant 0 : index
    %11 = vector.load %arg5[%c0_8, %c0_9, %c0_10, %c0_11] : memref<1x3x8x128xf32, #tpu.memory_space<vmem>>, vector<1x1x8x128xf32>
    %12 = vector.shape_cast %11 : vector<1x1x8x128xf32> to vector<8x128xf32>
    %13 = vector.broadcast %1 : f32 to vector<8x128xf32>
    %14 = arith.mulf %13, %12 : vector<8x128xf32>
    %15 = arith.addf %10, %14 : vector<8x128xf32>
    %c0_12 = arith.constant 0 : index
    %c0_13 = arith.constant 0 : index
    %c0_14 = arith.constant 0 : index
    %c0_15 = arith.constant 0 : index
    %16 = vector.load %arg6[%c0_12, %c0_13, %c0_14, %c0_15] : memref<1x3x8x128xf32, #tpu.memory_space<vmem>>, vector<1x1x8x128xf32>
    %17 = vector.shape_cast %16 : vector<1x1x8x128xf32> to vector<8x128xf32>
    %18 = vector.shape_cast %15 : vector<8x128xf32> to vector<1x1x8x128xf32>
    tpu.vector_store %arg6[%c0_12, %c0_13, %c0_14, %c0_15], %18 {strides = array<i32>} : memref<1x3x8x128xf32, #tpu.memory_space<vmem>>, vector<1x1x8x128xf32>,
    %19 = vector.extract_strided_slice %8 {offsets = [16, 0], sizes = [16, 128], strides = [1, 1]} : vector<48x128xbf16> to vector<16x128xbf16>
    %cst_16 = arith.constant dense<0.000000e+00> : vector<8x128xf32>
    %20 = tpu.matmul %4, %19, %cst_16 {dimension_numbers = #tpu.dot_dimension_numbers<[1], [0], [0], [1], [0, 0, 1, 1], [], []>} : vector<8x16xbf16>, vector<16x128xbf16>, vector<8x128xf32> -> vector<8x128xf32>
    %c0_17 = arith.constant 0 : index
    %c1 = arith.constant 1 : index
    %c0_18 = arith.constant 0 : index
    %c0_19 = arith.constant 0 : index
    %21 = vector.load %arg5[%c0_17, %c1, %c0_18, %c0_19] : memref<1x3x8x128xf32, #tpu.memory_space<vmem>>, vector<1x1x8x128xf32>
    %22 = vector.shape_cast %21 : vector<1x1x8x128xf32> to vector<8x128xf32>
    %23 = vector.broadcast %1 : f32 to vector<8x128xf32>
    %24 = arith.mulf %23, %22 : vector<8x128xf32>
    %25 = arith.addf %20, %24 : vector<8x128xf32>
    %c0_20 = arith.constant 0 : index
    %c1_21 = arith.constant 1 : index
    %c0_22 = arith.constant 0 : index
    %c0_23 = arith.constant 0 : index
    %26 = vector.load %arg6[%c0_20, %c1_21, %c0_22, %c0_23] : memref<1x3x8x128xf32, #tpu.memory_space<vmem>>, vector<1x1x8x128xf32>
    %27 = vector.shape_cast %26 : vector<1x1x8x128xf32> to vector<8x128xf32>
    %28 = vector.shape_cast %25 : vector<8x128xf32> to vector<1x1x8x128xf32>
    tpu.vector_store %arg6[%c0_20, %c1_21, %c0_22, %c0_23], %28 {strides = array<i32>} : memref<1x3x8x128xf32, #tpu.memory_space<vmem>>, vector<1x1x8x128xf32>,
    %29 = vector.extract_strided_slice %8 {offsets = [32, 0], sizes = [16, 128], strides = [1, 1]} : vector<48x128xbf16> to vector<16x128xbf16>
    %cst_24 = arith.constant dense<0.000000e+00> : vector<8x128xf32>
    %30 = tpu.matmul %4, %29, %cst_24 {dimension_numbers = #tpu.dot_dimension_numbers<[1], [0], [0], [1], [0, 0, 1, 1], [], []>} : vector<8x16xbf16>, vector<16x128xbf16>, vector<8x128xf32> -> vector<8x128xf32>
    %c0_25 = arith.constant 0 : index
    %c2 = arith.constant 2 : index
    %c0_26 = arith.constant 0 : index
    %c0_27 = arith.constant 0 : index
    %31 = vector.load %arg5[%c0_25, %c2, %c0_26, %c0_27] : memref<1x3x8x128xf32, #tpu.memory_space<vmem>>, vector<1x1x8x128xf32>
    %32 = vector.shape_cast %31 : vector<1x1x8x128xf32> to vector<8x128xf32>
    %33 = vector.broadcast %1 : f32 to vector<8x128xf32>
    %34 = arith.mulf %33, %32 : vector<8x128xf32>
    %35 = arith.addf %30, %34 : vector<8x128xf32>
    %c0_28 = arith.constant 0 : index
    %c2_29 = arith.constant 2 : index
    %c0_30 = arith.constant 0 : index
    %c0_31 = arith.constant 0 : index
    %36 = vector.load %arg6[%c0_28, %c2_29, %c0_30, %c0_31] : memref<1x3x8x128xf32, #tpu.memory_space<vmem>>, vector<1x1x8x128xf32>
    %37 = vector.shape_cast %36 : vector<1x1x8x128xf32> to vector<8x128xf32>
    %38 = vector.shape_cast %35 : vector<8x128xf32> to vector<1x1x8x128xf32>
    tpu.vector_store %arg6[%c0_28, %c2_29, %c0_30, %c0_31], %38 {strides = array<i32>} : memref<1x3x8x128xf32, #tpu.memory_space<vmem>>, vector<1x1x8x128xf32>,
    return
  }
  func.func @transform_0(%arg0: i32) -> i32 {
    %c0_i32 = arith.constant 0 : i32
    %c0_i32_0 = arith.constant 0 : i32
    return %c0_i32 : i32
  }
  func.func @transform_1(%arg0: i32) -> (i32, i32) {
    %c0_i32 = arith.constant 0 : i32
    %c0_i32_0 = arith.constant 0 : i32
    %c0_i32_1 = arith.constant 0 : i32
    return %c0_i32, %c0_i32_0 : i32, i32
  }
  func.func @transform_2(%arg0: i32) -> (i32, i32, i32) {
    %c0_i32 = arith.constant 0 : i32
    %c0_i32_0 = arith.constant 0 : i32
    %c0_i32_1 = arith.constant 0 : i32
    return %arg0, %c0_i32, %c0_i32_0 : i32, i32, i32
  }
  func.func @transform_3(%arg0: i32) -> (i32, i32, i32) {
    %c0_i32 = arith.constant 0 : i32
    %c0_i32_0 = arith.constant 0 : i32
    %c0_i32_1 = arith.constant 0 : i32
    return %arg0, %c0_i32, %c0_i32_0 : i32, i32, i32
  }
  func.func @transform_4(%arg0: i32) -> (i32, i32, i32, i32) {
    %c0_i32 = arith.constant 0 : i32
    %c0_i32_0 = arith.constant 0 : i32
    %c0_i32_1 = arith.constant 0 : i32
    %c0_i32_2 = arith.constant 0 : i32
    return %arg0, %c0_i32, %c0_i32_0, %c0_i32_1 : i32, i32, i32, i32
  }
  func.func @transform_5(%arg0: i32) -> (i32, i32, i32, i32) {
    %c0_i32 = arith.constant 0 : i32
    %c0_i32_0 = arith.constant 0 : i32
    %c0_i32_1 = arith.constant 0 : i32
    %c0_i32_2 = arith.constant 0 : i32
    return %arg0, %c0_i32, %c0_i32_0, %c0_i32_1 : i32, i32, i32, i32
  }
}

</mosaic_0001>

<llo_original>
// kernel: tpu_custom_call.1
$region0: #{tpu_custom_call.1}
  #allocation0 [shape = 'u32[]', space=smem, size = 0x4, offset = 0x4, fixed_abs, tag = 'smem constant byte address 0x4 - core index']
  #allocation1 [shape = 'u32[144,128]{1,0:T(1,128)}', space=vmem, size = 0x12000, scoped, tag = 'internal scratch']
  %s0 = inlined_call_operand.vmem [shape: f32[4], index: 0, kind: input, shape index: {}]
  %s1 = inlined_call_operand.vmem [shape: bf16[48,16], index: 1, kind: input, shape index: {}]
  %s2 = inlined_call_operand.vmem [shape: bf16[4,8,16], index: 2, kind: input, shape index: {}]
  %s3 = inlined_call_operand.vmem [shape: bf16[4,128,16], index: 3, kind: input, shape index: {}]
  %s4 = inlined_call_operand.vmem [shape: f32[4,3,8,128], index: 4, kind: input, shape index: {}]
  %s5 = inlined_call_operand.hbm [shape: f32[4,3,8,128], index: 5, kind: output, shape index: {}]
  %s6 = sld [smem:[#allocation0]]
  $region57: #{tpu_custom_call.1} parent=0
    _
  %s8 = ssub.s32 1, %s6
  %s9 = scalar_select 0, %s8, %s6
  $region1: #{tpu_custom_call.1} parent=0
    #allocation2 [shape = 'u8[512]{0}', space=smem, size = 0x200, scoped, tag = 'input window, operand 0, single buffered']
    #allocation3 [shape = 's32[2]{0}', space=sflag, size = 0x8, scoped, tag = 'scoped memory for tpu_custom_call.1']
    #allocation4 [shape = 's32[2]{0}', space=sflag, size = 0x8, scoped, tag = 'scoped memory for tpu_custom_call.1']
    #allocation5 [shape = 'u8[24576]{0}', space=vmem, size = 0x6000, scoped, tag = 'output window, operand 0']
    %10 = vsyncpa [#allocation4], 0
    %11 = vsyncpa [#allocation3], 0
    %s12 = scalar_lea.sflag [#allocation3], 1
    %13 = vsyncpa %s12, 0
    loop: start=0, step=1, limit=6
    $region2: #{tpu_custom_call.1} parent=1 // loop_pre_header
      _
    $region3: #{tpu_custom_call.1} parent=1 // loop_header
      %s15 = sphi 0, %s19
      %p16 = scmp.ge.s32.totalorder %s15, 6
      %s23 = sphi 0, %s23
      %s25 = sphi 0, %s23
      %s26 = sphi 0, %s25
      %s40 = sphi 0, %s26
      %s44 = sphi 0, %s44
      %s46 = sphi 0, %s44
      %s47 = sphi 0, %s46
      %s61 = sphi 0, %s47
      %s67 = sphi 0, %s69
      %s70 = sphi 0, %s67
      %s71 = sphi 0, %s70
      %s87 = sphi 0, %s71
      %s93 = sphi 0, %s95
      %s96 = sphi 0, %s93
      %s97 = sphi 0, %s96
      %s113 = sphi 0, %s97
      %s119 = sphi 0, %s121
      %s122 = sphi 0, %s119
      %s123 = sphi 0, %s122
      %s139 = sphi 0, %s123
      %s145 = sphi 0, %s147
      %s148 = sphi 0, %s145
      %s149 = sphi 0, %s148
      %s165 = sphi 0, %s149
    $region4: #{tpu_custom_call.1} parent=1 // loop_header_branch
      %18 = sbr.rel (%p16) target = $region8
    $region5: #{tpu_custom_call.1} parent=1 // loop_body
      %s20 = ssub.s32 %s15, 1
      %s21 = ssub.s32 %s15, 2
      %s22 = sadd.s32 %s15, 1
      %s24 = sadd.s32 %s23, 1
      %p27 = scmp.eq.s32.totalorder %s15, 3
      %p28 = scmp.ne.s32.totalorder %s23, %s25
      %p29 = scmp.eq.s32.totalorder %s15, 0
      %p30 = por %p28, %p29
      %p31 = scmp.ne.s32.totalorder %s23, %s25
      %p32 = scmp.eq.s32.totalorder %s20, 3
      %p33 = por %p31, %p32
      %p34 = scmp.ne.s32.totalorder %s25, %s26
      %p35 = scmp.eq.s32.totalorder %s20, 0
      %p36 = por %p34, %p35
      %p37 = scmp.ne.s32.totalorder %s25, %s26
      %p38 = scmp.eq.s32.totalorder %s21, 3
      %p39 = por %p37, %p38
      %p41 = scmp.ne.s32.totalorder %s26, %s40
      %p42 = scmp.eq.s32.totalorder %s21, 0
      %p43 = por %p41, %p42
      %s45 = sadd.s32 %s44, 1
      %p48 = scmp.eq.s32.totalorder %s15, 3
      %p49 = scmp.ne.s32.totalorder %s44, %s46
      %p50 = scmp.eq.s32.totalorder %s15, 0
      %p51 = por %p49, %p50
      %p52 = scmp.ne.s32.totalorder %s44, %s46
      %p53 = scmp.eq.s32.totalorder %s20, 3
      %p54 = por %p52, %p53
      %p55 = scmp.ne.s32.totalorder %s46, %s47
      %p56 = scmp.eq.s32.totalorder %s20, 0
      %p57 = por %p55, %p56
      %p58 = scmp.ne.s32.totalorder %s46, %s47
      %p59 = scmp.eq.s32.totalorder %s21, 3
      %p60 = por %p58, %p59
      %p62 = scmp.ne.s32.totalorder %s47, %s61
      %p63 = scmp.eq.s32.totalorder %s21, 0
      %p64 = por %p62, %p63
      %s65 = ssub.s32 %s15, %s22
      %p66 = scmp.eq.s32.totalorder %s65, 0
      %s68 = sadd.s32 %s67, 1
      %s69 = scalar_select %p66, %s67, %s68
      %p72 = pneg %p66
      %p73 = scmp.eq.s32.totalorder %s15, 3
      %p74 = por %p72, %p73
      %p75 = scmp.ne.s32.totalorder %s67, %s70
      %p76 = scmp.eq.s32.totalorder %s15, 0
      %p77 = por %p75, %p76
      %p78 = scmp.ne.s32.totalorder %s67, %s70
      %p79 = scmp.eq.s32.totalorder %s20, 3
      %p80 = por %p78, %p79
      %p81 = scmp.ne.s32.totalorder %s70, %s71
      %p82 = scmp.eq.s32.totalorder %s20, 0
      %p83 = por %p81, %p82
      %p84 = scmp.ne.s32.totalorder %s70, %s71
      %p85 = scmp.eq.s32.totalorder %s21, 3
      %p86 = por %p84, %p85
      %p88 = scmp.ne.s32.totalorder %s71, %s87
      %p89 = scmp.eq.s32.totalorder %s21, 0
      %p90 = por %p88, %p89
      %s91 = ssub.s32 %s15, %s22
      %p92 = scmp.eq.s32.totalorder %s91, 0
      %s94 = sadd.s32 %s93, 1
      %s95 = scalar_select %p92, %s93, %s94
      %p98 = pneg %p92
      %p99 = scmp.eq.s32.totalorder %s15, 3
      %p100 = por %p98, %p99
      %p101 = scmp.ne.s32.totalorder %s93, %s96
      %p102 = scmp.eq.s32.totalorder %s15, 0
      %p103 = por %p101, %p102
      %p104 = scmp.ne.s32.totalorder %s93, %s96
      %p105 = scmp.eq.s32.totalorder %s20, 3
      %p106 = por %p104, %p105
      %p107 = scmp.ne.s32.totalorder %s96, %s97
      %p108 = scmp.eq.s32.totalorder %s20, 0
      %p109 = por %p107, %p108
      %p110 = scmp.ne.s32.totalorder %s96, %s97
      %p111 = scmp.eq.s32.totalorder %s21, 3
      %p112 = por %p110, %p111
      %p114 = scmp.ne.s32.totalorder %s97, %s113
      %p115 = scmp.eq.s32.totalorder %s21, 0
      %p116 = por %p114, %p115
      %s117 = ssub.s32 %s15, %s22
      %p118 = scmp.eq.s32.totalorder %s117, 0
      %s120 = sadd.s32 %s119, 1
      %s121 = scalar_select %p118, %s119, %s120
      %p124 = pneg %p118
      %p125 = scmp.eq.s32.totalorder %s15, 3
      %p126 = por %p124, %p125
      %p127 = scmp.ne.s32.totalorder %s119, %s122
      %p128 = scmp.eq.s32.totalorder %s15, 0
      %p129 = por %p127, %p128
      %p130 = scmp.ne.s32.totalorder %s119, %s122
      %p131 = scmp.eq.s32.totalorder %s20, 3
      %p132 = por %p130, %p131
      %p133 = scmp.ne.s32.totalorder %s122, %s123
      %p134 = scmp.eq.s32.totalorder %s20, 0
      %p135 = por %p133, %p134
      %p136 = scmp.ne.s32.totalorder %s122, %s123
      %p137 = scmp.eq.s32.totalorder %s21, 3
      %p138 = por %p136, %p137
      %p140 = scmp.ne.s32.totalorder %s123, %s139
      %p141 = scmp.eq.s32.totalorder %s21, 0
      %p142 = por %p140, %p141
      %s143 = ssub.s32 %s15, %s22
      %p144 = scmp.eq.s32.totalorder %s143, 0
      %s146 = sadd.s32 %s145, 1
      %s147 = scalar_select %p144, %s145, %s146
      %p150 = pneg %p144
      %p151 = scmp.eq.s32.totalorder %s15, 3
      %p152 = por %p150, %p151
      %p153 = scmp.ne.s32.totalorder %s145, %s148
      %p154 = scmp.eq.s32.totalorder %s15, 0
      %p155 = por %p153, %p154
      %p156 = scmp.ne.s32.totalorder %s145, %s148
      %p157 = scmp.eq.s32.totalorder %s20, 3
      %p158 = por %p156, %p157
      %p159 = scmp.ne.s32.totalorder %s148, %s149
      %p160 = scmp.eq.s32.totalorder %s20, 0
      %p161 = por %p159, %p160
      %p162 = scmp.ne.s32.totalorder %s148, %s149
      %p163 = scmp.eq.s32.totalorder %s21, 3
      %p164 = por %p162, %p163
      %p166 = scmp.ne.s32.totalorder %s149, %s165
      %p167 = scmp.eq.s32.totalorder %s21, 0
      %p168 = por %p166, %p167
      %p169 = scmp.le.s32.totalorder 1, %s15
      %p170 = scmp.lt.s32.totalorder %s15, 5
      %p171 = pnand %p169, %p170
      %p172 = pneg %p171
      // Predicated region
      $region9: #{tpu_custom_call.1} parent=5 // pred_check
        _
      $region10: #{tpu_custom_call.1} parent=5 // pred_check_branch
        %174 = sbr.rel (%p171) target = $region12
      $region11: #{tpu_custom_call.1} parent=5 // pred_region
        %s175 = ssub.s32 %s15, 1
        // Predicated region
        $region13: #{tpu_custom_call.1} parent=11 // pred_check
          %p176 = pneg %p36
        $region14: #{tpu_custom_call.1} parent=11 // pred_check_branch
          %178 = sbr.rel (%p176) target = $region16
        $region15: #{tpu_custom_call.1} parent=11 // pred_region
          %s180 = ssub.s32 16, 16
          %181 = vsyncadd [#allocation4], %s180
          %s183 = sshll.u32 %s0, 4
          %s184 = int_to_ptr.vmem [resolvable:$true] %s183
          %186 = dma.vmem_to_smem %s184, 16, [#allocation2], [#allocation4]
        $region16: #{tpu_custom_call.1} parent=11 // pred_fallthru
          _
        // Predicated region
        $region17: #{tpu_custom_call.1} parent=11 // pred_check
          %p187 = pneg %p57
        $region18: #{tpu_custom_call.1} parent=11 // pred_check_branch
          %189 = sbr.rel (%p187) target = $region20
        $region19: #{tpu_custom_call.1} parent=11 // pred_region
          _
        $region20: #{tpu_custom_call.1} parent=11 // pred_fallthru
          _
      $region12: #{tpu_custom_call.1} parent=5 // pred_fallthru
        _
      %p190 = scmp.lt.s32.totalorder %s15, 4
      // Predicated region
      $region21: #{tpu_custom_call.1} parent=5 // pred_check
        %p191 = pneg %p190
      $region22: #{tpu_custom_call.1} parent=5 // pred_check_branch
        %193 = sbr.rel (%p191) target = $region24
      $region23: #{tpu_custom_call.1} parent=5 // pred_region
        // Predicated region
        $region25: #{tpu_custom_call.1} parent=23 // pred_check
          %p194 = pneg %p77
        $region26: #{tpu_custom_call.1} parent=23 // pred_check_branch
          %196 = sbr.rel (%p194) target = $region28
        $region27: #{tpu_custom_call.1} parent=23 // pred_region
          %p197 = scmp.lt.s32.totalorder %s15, 3
          %s198 = scalar_select %p197, %s15, 3
          %s199 = smul.addr %s198, 4
          %s200 = scalar_lea.vmem %s2, %s199
        $region28: #{tpu_custom_call.1} parent=23 // pred_fallthru
          _
        // Predicated region
        $region29: #{tpu_custom_call.1} parent=23 // pred_check
          %p201 = pneg %p103
        $region30: #{tpu_custom_call.1} parent=23 // pred_check_branch
          %203 = sbr.rel (%p201) target = $region32
        $region31: #{tpu_custom_call.1} parent=23 // pred_region
          %p204 = scmp.lt.s32.totalorder %s15, 3
          %s205 = scalar_select %p204, %s15, 3
          %s206 = smul.addr %s205, 16
          %s207 = smul.addr %s206, 4
          %s208 = scalar_lea.vmem %s3, %s207
        $region32: #{tpu_custom_call.1} parent=23 // pred_fallthru
          _
        // Predicated region
        $region33: #{tpu_custom_call.1} parent=23 // pred_check
          %p209 = pneg %p129
        $region34: #{tpu_custom_call.1} parent=23 // pred_check_branch
          %211 = sbr.rel (%p209) target = $region36
        $region35: #{tpu_custom_call.1} parent=23 // pred_region
          %p212 = scmp.lt.s32.totalorder %s15, 3
          %s213 = scalar_select %p212, %s15, 3
          %s214 = smul.addr %s213, 3
          %s215 = smul.addr %s214, 8
          %s216 = scalar_lea.vmem %s4, %s215
        $region36: #{tpu_custom_call.1} parent=23 // pred_fallthru
          _
      $region24: #{tpu_custom_call.1} parent=5 // pred_fallthru
        _
      %p217 = scmp.le.s32.totalorder 1, %s15
      %p218 = scmp.lt.s32.totalorder %s15, 5
      %p219 = pnand %p217, %p218
      %p220 = pneg %p219
      // Predicated region
      $region37: #{tpu_custom_call.1} parent=5 // pred_check
        _
      $region38: #{tpu_custom_call.1} parent=5 // pred_check_branch
        %222 = sbr.rel (%p219) target = $region40
      $region39: #{tpu_custom_call.1} parent=5 // pred_region
        %s223 = ssub.s32 %s15, 1
        // Predicated region
        $region41: #{tpu_custom_call.1} parent=39 // pred_check
          %p224 = pneg %p36
        $region42: #{tpu_custom_call.1} parent=39 // pred_check_branch
          %226 = sbr.rel (%p224) target = $region44
        $region43: #{tpu_custom_call.1} parent=39 // pred_region
          %227 = dma.done [#allocation4], 16
        $region44: #{tpu_custom_call.1} parent=39 // pred_fallthru
          _
        %228 = sfence
        %p229 = pneg %p36
        %p230 = pneg %p33
        %p231 = pneg %p57
        %p232 = pneg %p54
        %p233 = scmp.lt.s32.totalorder %s20, 3
        %s234 = scalar_select %p233, %s20, 3
        %s235 = smul.addr %s234, 4
        %s236 = scalar_lea.vmem %s2, %s235
        %p237 = pneg %p83
        %p238 = pneg %p80
        %p239 = scmp.lt.s32.totalorder %s20, 3
        %s240 = scalar_select %p239, %s20, 3
        %s241 = smul.addr %s240, 16
        %s242 = smul.addr %s241, 4
        %s243 = scalar_lea.vmem %s3, %s242
        %p244 = pneg %p109
        %p245 = pneg %p106
        %p246 = scmp.lt.s32.totalorder %s20, 3
        %s247 = scalar_select %p246, %s20, 3
        %s248 = smul.addr %s247, 3
        %s249 = smul.addr %s248, 8
        %s250 = scalar_lea.vmem %s4, %s249
        %p251 = pneg %p135
        %p252 = pneg %p132
        %p253 = pneg %p161
        %p254 = pneg %p158
        %s255 = sand.u32 %s148, 1
        %s256 = scalar_lea.sflag [#allocation3], %s255
        %s257 = sand.u32 %s148, 1
        %s258 = smul.addr %s257, 24
        %s259 = scalar_lea.vmem [#allocation5], %s258
        %p260 = scmp.lt.s32.totalorder %s20, 3
        %s261 = scalar_select %p260, %s20, 3
        %s262 = smul.addr %s261, 4
        %s263 = scalar_lea.vmem %s2, %s262
        %p264 = scmp.lt.s32.totalorder %s20, 3
        %s265 = scalar_select %p264, %s20, 3
        %s266 = smul.addr %s265, 16
        %s267 = smul.addr %s266, 4
        %s268 = scalar_lea.vmem %s3, %s267
        %p269 = scmp.lt.s32.totalorder %s20, 3
        %s270 = scalar_select %p269, %s20, 3
        %s271 = smul.addr %s270, 3
        %s272 = smul.addr %s271, 8
        %s273 = scalar_lea.vmem %s4, %s272
        %s275 = sld [smem:[#allocation2 + %s20]]
        %v276 = vld [vmem:[%s1] sm:$0xf]
        %v277 = vld [vmem:[%s1 + $0x4] sm:$0xf]
        %v278 = vld [vmem:[%s1 + $0x8] sm:$0xf]
        %v279 = vld [vmem:[%s1 + $0xc] sm:$0xf]
        %v280 = vld [vmem:[%s1 + $0x10] sm:$0xf]
        %v281 = vld [vmem:[%s1 + $0x14] sm:$0xf]
        %v282 = vld [vmem:[%s263] sm:$0xf]
        %v283 = vld [vmem:[%s268] sm:$0xf]
        %v284 = vld [vmem:[%s268 + $0x4] sm:$0xf]
        %v285 = vld [vmem:[%s268 + $0x8] sm:$0xf]
        %v286 = vld [vmem:[%s268 + $0xc] sm:$0xf]
        %v287 = vld [vmem:[%s268 + $0x10] sm:$0xf]
        %v288 = vld [vmem:[%s268 + $0x14] sm:$0xf]
        %v289 = vld [vmem:[%s268 + $0x18] sm:$0xf]
        %v290 = vld [vmem:[%s268 + $0x1c] sm:$0xf]
        %v291 = vld [vmem:[%s268 + $0x20] sm:$0xf]
        %v292 = vld [vmem:[%s268 + $0x24] sm:$0xf]
        %v293 = vld [vmem:[%s268 + $0x28] sm:$0xf]
        %v294 = vld [vmem:[%s268 + $0x2c] sm:$0xf]
        %v295 = vld [vmem:[%s268 + $0x30] sm:$0xf]
        %v296 = vld [vmem:[%s268 + $0x34] sm:$0xf]
        %v297 = vld [vmem:[%s268 + $0x38] sm:$0xf]
        %v298 = vld [vmem:[%s268 + $0x3c] sm:$0xf]
        %v305 = vunpack.c.l.b16 %v276
        %v306 = vunpack.c.l.b16 %v277
        %v307 = vunpack.c.l.b16 %v278
        %v308 = vunpack.c.l.b16 %v279
        %v309 = vunpack.c.l.b16 %v280
        %v310 = vunpack.c.l.b16 %v281
        %v311 = vpack.c.b16 %v306, %v305
        %v312 = vpack.c.b16 %v308, %v307
        %v313 = vpack.c.b16 %v310, %v309
        %v330 = vunpack.c.l.b16 %v283
        %v331 = vunpack.c.l.b16 %v284
        %v332 = vunpack.c.l.b16 %v285
        %v333 = vunpack.c.l.b16 %v286
        %v334 = vunpack.c.l.b16 %v287
        %v335 = vunpack.c.l.b16 %v288
        %v336 = vunpack.c.l.b16 %v289
        %v337 = vunpack.c.l.b16 %v290
        %v338 = vunpack.c.l.b16 %v291
        %v339 = vunpack.c.l.b16 %v292
        %v340 = vunpack.c.l.b16 %v293
        %v341 = vunpack.c.l.b16 %v294
        %v342 = vunpack.c.l.b16 %v295
        %v343 = vunpack.c.l.b16 %v296
        %v344 = vunpack.c.l.b16 %v297
        %v345 = vunpack.c.l.b16 %v298
        %v346 = vpack.c.b16 %v331, %v330
        %v347 = vpack.c.b16 %v333, %v332
        %v348 = vpack.c.b16 %v335, %v334
        %v349 = vpack.c.b16 %v337, %v336
        %v350 = vpack.c.b16 %v339, %v338
        %v351 = vpack.c.b16 %v341, %v340
        %v352 = vpack.c.b16 %v343, %v342
        %v353 = vpack.c.b16 %v345, %v344
        %vm354 = vcmask 130048
        %v356 = vsel %vm354, %v311, 0
        %v359 = vsel %vm354, %v312, 0
        %v362 = vsel %vm354, %v313, 0
        %v365 = vsel %vm354, %v346, 0
        %v368 = vsel %vm354, %v347, 0
        %v371 = vsel %vm354, %v348, 0
        %v374 = vsel %vm354, %v349, 0
        %v377 = vsel %vm354, %v350, 0
        %v380 = vsel %vm354, %v351, 0
        %v383 = vsel %vm354, %v352, 0
        %v386 = vsel %vm354, %v353, 0
        %388 = vmatprep.subr.bf16.mxu0 0
        %389 = vmatpush1.bf16.xpose.msra.mxu0 %v365
        %390 = vmatprep.subr.bf16.mxu0 0
        %391 = vmatpush1.bf16.xpose.msra.mxu0 %v368
        %392 = vmatprep.subr.bf16.mxu0 0
        %393 = vmatpush1.bf16.xpose.msra.mxu0 %v371
        %394 = vmatprep.subr.bf16.mxu0 0
        %395 = vmatpush1.bf16.xpose.msra.mxu0 %v374
        %396 = vmatprep.subr.bf16.mxu0 0
        %397 = vmatpush1.bf16.xpose.msra.mxu0 %v377
        %398 = vmatprep.subr.bf16.mxu0 0
        %399 = vmatpush1.bf16.xpose.msra.mxu0 %v380
        %400 = vmatprep.subr.bf16.mxu0 0
        %401 = vmatpush1.bf16.xpose.msra.mxu0 %v383
        %402 = vmatprep.subr.bf16.mxu0 0
        %403 = vmatpush1.bf16.xpose.msra.mxu0 %v386
        %404 = vmatprep.subr.bf16.mxu0 0
        %405 = vmatpush1.bf16.xpose.msra.mxu0 0
        %406 = vmatprep.subr.bf16.mxu0 0
        %407 = vmatpush1.bf16.xpose.msra.mxu0 0
        %408 = vmatprep.subr.bf16.mxu0 0
        %409 = vmatpush1.bf16.xpose.msra.mxu0 0
        %410 = vmatprep.subr.bf16.mxu0 0
        %411 = vmatpush1.bf16.xpose.msra.mxu0 0
        %412 = vmatprep.subr.bf16.mxu0 0
        %413 = vmatpush1.bf16.xpose.msra.mxu0 0
        %414 = vmatprep.subr.bf16.mxu0 0
        %415 = vmatpush1.bf16.xpose.msra.mxu0 0
        %416 = vmatprep.subr.bf16.mxu0 0
        %417 = vmatpush1.bf16.xpose.msra.mxu0 0
        %418 = vmatprep.subr.bf16.mxu0 0
        %419 = vmatpush1.bf16.xpose.msra.mxu0 0
        %420 = vmatprep.mubr.bf16.mxu0 0
        %421 = vmatmul.mubr.bf16.gmra.mrb[0].mxu0 %v356
        %v422 = vpop.f32.mrb[0].mxu0
        %v423 = vadd.f32 0.0, %v422
        %v424 = vpop.f32.mrb[0].mxu0
        %v425 = vpop.f32.mrb[0].mxu0
        %v426 = vadd.f32 0.0, %v425
        %v427 = vpop.f32.mrb[0].mxu0
        %428 = vmatprep.mubr.bf16.mxu0 0
        %429 = vmatmul.mubr.bf16.gmra.mrb[0].mxu0 %v359
        %v430 = vpop.f32.mrb[0].mxu0
        %v431 = vadd.f32 0.0, %v430
        %v432 = vpop.f32.mrb[0].mxu0
        %v433 = vpop.f32.mrb[0].mxu0
        %v434 = vadd.f32 0.0, %v433
        %v435 = vpop.f32.mrb[0].mxu0
        %436 = vmatprep.mubr.bf16.mxu0 0
        %437 = vmatmul.mubr.bf16.gmra.mrb[0].mxu0 %v362
        %v438 = vpop.f32.mrb[0].mxu0
        %v439 = vadd.f32 0.0, %v438
        %v440 = vpop.f32.mrb[0].mxu0
        %v441 = vpop.f32.mrb[0].mxu0
        %v442 = vadd.f32 0.0, %v441
        %v443 = vpop.f32.mrb[0].mxu0
        %444 = vdwg.mxu0
        %v445 = vpack.c.bf16 %v426, %v423
        %v446 = vpack.c.bf16 %v434, %v431
        %v447 = vpack.c.bf16 %v442, %v439
        %v448 = vld [vmem:[%s273] sm:$0xff]
        %v449 = vstv %s275
        %v450 = vmul.f32 %v449, %v448
        %v452 = vsel %vm354, %v282, 0
        %454 = vmatprep.subr.bf16.mxu0 0
        %455 = vmatpush1.bf16.msra.mxu0 %v445
        %456 = vmatprep.subr.bf16.mxu0 0
        %457 = vmatpush1.bf16.msra.mxu0 0
        %458 = vmatprep.subr.bf16.mxu0 0
        %459 = vmatpush1.bf16.msra.mxu0 0
        %460 = vmatprep.subr.bf16.mxu0 0
        %461 = vmatpush1.bf16.msra.mxu0 0
        %462 = vmatprep.subr.bf16.mxu0 0
        %463 = vmatpush1.bf16.msra.mxu0 0
        %464 = vmatprep.subr.bf16.mxu0 0
        %465 = vmatpush1.bf16.msra.mxu0 0
        %466 = vmatprep.subr.bf16.mxu0 0
        %467 = vmatpush1.bf16.msra.mxu0 0
        %468 = vmatprep.subr.bf16.mxu0 0
        %469 = vmatpush1.bf16.msra.mxu0 0
        %470 = vmatprep.subr.bf16.mxu0 0
        %471 = vmatpush1.bf16.msra.mxu0 0
        %472 = vmatprep.subr.bf16.mxu0 0
        %473 = vmatpush1.bf16.msra.mxu0 0
        %474 = vmatprep.subr.bf16.mxu0 0
        %475 = vmatpush1.bf16.msra.mxu0 0
        %476 = vmatprep.subr.bf16.mxu0 0
        %477 = vmatpush1.bf16.msra.mxu0 0
        %478 = vmatprep.subr.bf16.mxu0 0
        %479 = vmatpush1.bf16.msra.mxu0 0
        %480 = vmatprep.subr.bf16.mxu0 0
        %481 = vmatpush1.bf16.msra.mxu0 0
        %482 = vmatprep.subr.bf16.mxu0 0
        %483 = vmatpush1.bf16.msra.mxu0 0
        %484 = vmatprep.subr.bf16.mxu0 0
        %485 = vmatpush1.bf16.msra.mxu0 0
        %486 = vmatprep.mubr.bf16.mxu0 0
        %487 = vmatmul.mubr.bf16.gmra.mrb[0].mxu0 %v452
        %v488 = vpop.f32.mrb[0].mxu0
        %v489 = vadd.f32 %v450, %v488
        %v490 = vpop.f32.mrb[0].mxu0
        %v491 = vpop.f32.mrb[0].mxu0
        %v492 = vpop.f32.mrb[0].mxu0
        %493 = vdwg.mxu0
        %494 = vst [vmem:[%s259] sm:$0xff] %v489
        %s495 = scalar_lea.vmem %s273, 8
        %v496 = vld [vmem:[%s495] sm:$0xff]
        %v497 = vmul.f32 %v449, %v496
        %498 = vmatprep.subr.bf16.mxu0 0
        %499 = vmatpush1.bf16.msra.mxu0 %v446
        %500 = vmatprep.subr.bf16.mxu0 0
        %501 = vmatpush1.bf16.msra.mxu0 0
        %502 = vmatprep.subr.bf16.mxu0 0
        %503 = vmatpush1.bf16.msra.mxu0 0
        %504 = vmatprep.subr.bf16.mxu0 0
        %505 = vmatpush1.bf16.msra.mxu0 0
        %506 = vmatprep.subr.bf16.mxu0 0
        %507 = vmatpush1.bf16.msra.mxu0 0
        %508 = vmatprep.subr.bf16.mxu0 0
        %509 = vmatpush1.bf16.msra.mxu0 0
        %510 = vmatprep.subr.bf16.mxu0 0
        %511 = vmatpush1.bf16.msra.mxu0 0
        %512 = vmatprep.subr.bf16.mxu0 0
        %513 = vmatpush1.bf16.msra.mxu0 0
        %514 = vmatprep.subr.bf16.mxu0 0
        %515 = vmatpush1.bf16.msra.mxu0 0
        %516 = vmatprep.subr.bf16.mxu0 0
        %517 = vmatpush1.bf16.msra.mxu0 0
        %518 = vmatprep.subr.bf16.mxu0 0
        %519 = vmatpush1.bf16.msra.mxu0 0
        %520 = vmatprep.subr.bf16.mxu0 0
        %521 = vmatpush1.bf16.msra.mxu0 0
        %522 = vmatprep.subr.bf16.mxu0 0
        %523 = vmatpush1.bf16.msra.mxu0 0
        %524 = vmatprep.subr.bf16.mxu0 0
        %525 = vmatpush1.bf16.msra.mxu0 0
        %526 = vmatprep.subr.bf16.mxu0 0
        %527 = vmatpush1.bf16.msra.mxu0 0
        %528 = vmatprep.subr.bf16.mxu0 0
        %529 = vmatpush1.bf16.msra.mxu0 0
        %530 = vmatprep.mubr.bf16.mxu0 0
        %531 = vmatmul.mubr.bf16.gmra.mrb[0].mxu0 %v452
        %v532 = vpop.f32.mrb[0].mxu0
        %v533 = vadd.f32 %v497, %v532
        %v534 = vpop.f32.mrb[0].mxu0
        %v535 = vpop.f32.mrb[0].mxu0
        %v536 = vpop.f32.mrb[0].mxu0
        %537 = vdwg.mxu0
        %s538 = scalar_lea.vmem %s259, 8 [#allocation5]
        %539 = vst [vmem:[%s538] sm:$0xff] %v533
        %s540 = scalar_lea.vmem %s273, 16
        %v541 = vld [vmem:[%s540] sm:$0xff]
        %v542 = vmul.f32 %v449, %v541
        %543 = vmatprep.subr.bf16.mxu0 0
        %544 = vmatpush1.bf16.msra.mxu0 %v447
        %545 = vmatprep.subr.bf16.mxu0 0
        %546 = vmatpush1.bf16.msra.mxu0 0
        %547 = vmatprep.subr.bf16.mxu0 0
        %548 = vmatpush1.bf16.msra.mxu0 0
        %549 = vmatprep.subr.bf16.mxu0 0
        %550 = vmatpush1.bf16.msra.mxu0 0
        %551 = vmatprep.subr.bf16.mxu0 0
        %552 = vmatpush1.bf16.msra.mxu0 0
        %553 = vmatprep.subr.bf16.mxu0 0
        %554 = vmatpush1.bf16.msra.mxu0 0
        %555 = vmatprep.subr.bf16.mxu0 0
        %556 = vmatpush1.bf16.msra.mxu0 0
        %557 = vmatprep.subr.bf16.mxu0 0
        %558 = vmatpush1.bf16.msra.mxu0 0
        %559 = vmatprep.subr.bf16.mxu0 0
        %560 = vmatpush1.bf16.msra.mxu0 0
        %561 = vmatprep.subr.bf16.mxu0 0
        %562 = vmatpush1.bf16.msra.mxu0 0
        %563 = vmatprep.subr.bf16.mxu0 0
        %564 = vmatpush1.bf16.msra.mxu0 0
        %565 = vmatprep.subr.bf16.mxu0 0
        %566 = vmatpush1.bf16.msra.mxu0 0
        %567 = vmatprep.subr.bf16.mxu0 0
        %568 = vmatpush1.bf16.msra.mxu0 0
        %569 = vmatprep.subr.bf16.mxu0 0
        %570 = vmatpush1.bf16.msra.mxu0 0
        %571 = vmatprep.subr.bf16.mxu0 0
        %572 = vmatpush1.bf16.msra.mxu0 0
        %573 = vmatprep.subr.bf16.mxu0 0
        %574 = vmatpush1.bf16.msra.mxu0 0
        %575 = vmatprep.mubr.bf16.mxu0 0
        %576 = vmatmul.mubr.bf16.gmra.mrb[0].mxu0 %v452
        %v577 = vpop.f32.mrb[0].mxu0
        %v578 = vadd.f32 %v542, %v577
        %v579 = vpop.f32.mrb[0].mxu0
        %v580 = vpop.f32.mrb[0].mxu0
        %v581 = vpop.f32.mrb[0].mxu0
        %582 = vdwg.mxu0
        %s583 = scalar_lea.vmem %s259, 16 [#allocation5]
        %584 = vst [vmem:[%s583] sm:$0xff] %v578
        %s585 = sand.u32 %s148, 1
        %s586 = scalar_lea.sflag [#allocation3], %s585
        %s587 = sand.u32 %s148, 1
        %s588 = smul.addr %s587, 24
        %s589 = scalar_lea.vmem [#allocation5], %s588
        // Predicated region
        $region45: #{tpu_custom_call.1} parent=39 // pred_check
          %p590 = pneg %p158
        $region46: #{tpu_custom_call.1} parent=39 // pred_check_branch
          %592 = sbr.rel (%p590) target = $region48
        $region47: #{tpu_custom_call.1} parent=39 // pred_region
          %s594 = ssub.s32 384, 384
          %595 = vsyncadd %s586, %s594
          %s596 = smul.addr %s20, 3
          %s597 = smul.addr %s596, 128
          %s598 = scalar_lea.hbm %s5, %s597
          %s599 = sshll.u32 %s589, 4
          %s600 = int_to_ptr.vmem [resolvable:$true] %s599
          %605 = dma.vmem_to_hbm [thread:$0]  %s600, 384, %s598, %s586, 128, 128, 8
        $region48: #{tpu_custom_call.1} parent=39 // pred_fallthru
          _
      $region40: #{tpu_custom_call.1} parent=5 // pred_fallthru
        _
      %p606 = scmp.le.s32.totalorder 2, %s15
      // Predicated region
      $region49: #{tpu_custom_call.1} parent=5 // pred_check
        %p607 = pneg %p606
      $region50: #{tpu_custom_call.1} parent=5 // pred_check_branch
        %609 = sbr.rel (%p607) target = $region52
      $region51: #{tpu_custom_call.1} parent=5 // pred_region
        %s610 = ssub.s32 %s15, 2
        // Predicated region
        $region53: #{tpu_custom_call.1} parent=51 // pred_check
          %p611 = pneg %p164
        $region54: #{tpu_custom_call.1} parent=51 // pred_check_branch
          %613 = sbr.rel (%p611) target = $region56
        $region55: #{tpu_custom_call.1} parent=51 // pred_region
          %s614 = sand.u32 %s149, 1
          %s615 = scalar_lea.sflag [#allocation3], %s614
          %s616 = sand.u32 %s149, 1
          %s617 = smul.addr %s616, 24
          %s618 = scalar_lea.vmem [#allocation5], %s617
          %619 = dma.done %s615, 384
        $region56: #{tpu_custom_call.1} parent=51 // pred_fallthru
          _
      $region52: #{tpu_custom_call.1} parent=5 // pred_fallthru
        _
    $region6: #{tpu_custom_call.1} parent=1 // loop_footer
      %s19 = sadd.s32 1, %s15
    $region7: #{tpu_custom_call.1} parent=1 // loop_footer_branch
      %14 = sbr.rel target = $region3
    $region8: #{tpu_custom_call.1} parent=1 // loop_exit
      _
    %620 = vsyncpa [#allocation3], 1
    %s621 = scalar_lea.sflag [#allocation3], 1
    %622 = vsyncpa %s621, 1
    %623 = vsyncpa [#allocation4], 1
    %s624 = scalar_lea.sflag [#allocation4], 1
    %625 = vsyncpa %s624, 1

</llo_original>
